<compile_context>
chip_gen: v5e
topology: v5e:2x2
jax: 0.10.0
libtpu: 0.0.40
codegen_flags: <defaults>
</compile_context>

<pallas_src>
import functools

import jax
import jax.numpy as jnp
from jax.experimental import pallas as pl
from jax.experimental.pallas import tpu as pltpu


# Per-buffer tile budget.  (in + out) x double-buffering = 4x this = 8 MiB of
# VMEM: inside the scoped-VMEM default on v5e/v6e/v7x, and big enough that
# per-grid-step overhead is amortized (~85%+ of HBM roofline per measured data).
_TARGET_TILE_BYTES = 2 * 1024 * 1024

# Lane-dense slab width candidates (multiples of 128 -> unmasked full-width vst).
_COL_CANDIDATES = (2048, 1024, 512, 256, 128)


def _min_sublanes(dtype) -> int:
    """Minimum sublane tile for a dtype: 8 (4B), 16 (2B), 32 (1B)."""
    return {4: 8, 2: 16, 1: 32}.get(jnp.dtype(dtype).itemsize, 8)


def _padded_block_bytes(shape, dtype) -> int:
    """VMEM footprint of `shape` as a single block (last 2 dims tile-padded)."""
    if len(shape) == 0:
        shape = (1, 1)
    elif len(shape) == 1:
        shape = (1, shape[0])
    sub = _min_sublanes(dtype)
    itemsize = jnp.dtype(dtype).itemsize
    lead = 1
    for d in shape[:-2]:
        lead *= d
    r = -(-shape[-2] // sub) * sub
    c = -(-shape[-1] // 128) * 128
    return lead * r * c * itemsize


def _elementwise_kernel(func, x_ref, o_ref):
    o_ref[...] = func(x_ref[...])


class PallasLambda:
    """Pallas analogue of kitsu.module.func.Lambda for unary elementwise funcs.

    `func` must be a jnp-traceable, shape-preserving (elementwise) function of
    one array.  Set `in_place=True` only if the caller donates the input
    (enables input/output aliasing; otherwise XLA inserts a defensive copy).
    """

    def __init__(self, func, *, in_place=False):
        self._func = func
        self._in_place = in_place

    # ------------------------------------------------------------------ #

    def __call__(self, x):
        func = self._func
        orig_shape = x.shape
        n = x.size
        in_dtype = x.dtype
        in_itemsize = jnp.dtype(in_dtype).itemsize

        # Abstract eval to discover the output dtype (elementwise => same shape).
        out_aval = jax.eval_shape(func, jax.ShapeDtypeStruct(orig_shape, in_dtype))
        if out_aval.shape != orig_shape:
            raise ValueError(
                "PallasLambda only supports shape-preserving (elementwise) funcs"
            )
        out_dtype = out_aval.dtype
        out_itemsize = jnp.dtype(out_dtype).itemsize

        if n == 0:
            return jnp.zeros(orig_shape, out_dtype)

        kernel = functools.partial(_elementwise_kernel, func)
        cost = pl.CostEstimate(
            flops=2 * n,
            transcendentals=0,
            bytes_accessed=n * (in_itemsize + out_itemsize),
        )
        aliases = {0: 0} if (self._in_place and in_dtype == out_dtype) else {}
        sub = max(_min_sublanes(in_dtype), _min_sublanes(out_dtype))
        itemsize = max(in_itemsize, out_itemsize)

        # ---- Fast path: size divisible by 128 -> zero-copy lane-dense slab --
        if n % 128 == 0:
            cols = next(c for c in _COL_CANDIDATES if n % c == 0)
            rows = n // cols
            tile_rows = max(sub, (_TARGET_TILE_BYTES // (cols * itemsize)) // sub * sub)
            tile_rows = min(tile_rows, rows)
            x2 = x.reshape(rows, cols)  # free row-major reshape (no HBM copy)
            out2 = self._tiled_call(
                kernel, x2, out_dtype, tile_rows, cols, cost, aliases
            )
            return out2.reshape(orig_shape)

        # ---- Small odd-shaped arrays: single full-array block (no grid). ----
        # Full-dim blocks bypass the (8,128) divisibility rule; zero extra copies.
        if _padded_block_bytes(orig_shape, in_dtype) <= _TARGET_TILE_BYTES:
            x2 = x if x.ndim >= 2 else x.reshape(1, n)
            out = pl.pallas_call(
                kernel,
                out_shape=jax.ShapeDtypeStruct(x2.shape, out_dtype),
                cost_estimate=cost,
                input_output_aliases=aliases,
            )(x2)
            return out.reshape(orig_shape)

        # ---- Fallback: large array, size not a multiple of 128. ------------
        # Pad only up to the next multiple of `cols` (< cols-1 extra elements);
        # ragged last row-block is handled by the cdiv grid.  Edge-mode padding
        # keeps func's inputs finite (padded results are discarded anyway).
        cols = 512
        tile_rows = max(sub, (_TARGET_TILE_BYTES // (cols * itemsize)) // sub * sub)
        padded_n = pl.cdiv(n, cols) * cols
        x_flat = jnp.pad(jnp.ravel(x), (0, padded_n - n), mode="edge")
        rows = padded_n // cols
        tile_rows = min(tile_rows, rows)
        x2 = x_flat.reshape(rows, cols)
        out2 = self._tiled_call(kernel, x2, out_dtype, tile_rows, cols, cost, aliases)
        return out2.reshape(-1)[:n].reshape(orig_shape)

    # ------------------------------------------------------------------ #

    def _tiled_call(self, kernel, x2, out_dtype, tile_rows, cols, cost, aliases):
        rows = x2.shape[0]
        grid = (pl.cdiv(rows, tile_rows),)
        return pl.pallas_call(
            kernel,
            out_shape=jax.ShapeDtypeStruct((rows, cols), out_dtype),
            grid=grid,
            in_specs=[pl.BlockSpec((tile_rows, cols), lambda i: (i, 0))],
            out_specs=pl.BlockSpec((tile_rows, cols), lambda i: (i, 0)),
            compiler_params=pltpu.CompilerParams(
                dimension_semantics=("parallel",)  # shards across TCs on v7x
            ),
            cost_estimate=cost,
            input_output_aliases=aliases,
        )(x2)


if __name__ == "__main__":
    # Concrete instantiation of Lambda with a wrapped elementwise function.
    wrapped_fn = lambda x: x * 2.0 + 1.0  # noqa: E731
    module = PallasLambda(wrapped_fn)

    key = jax.random.PRNGKey(0)
    k1, k2, k3, k4, k5 = jax.random.split(key, 5)

    # 1) Small NCHW tensor (typical Lambda usage) -> lane-dense tiled path.
    x1 = jax.random.normal(k1, (2, 4, 16, 16), dtype=jnp.float32)
    y1 = jax.block_until_ready(module(x1))
    assert y1.shape == x1.shape and y1.dtype == x1.dtype
    assert jnp.allclose(y1, wrapped_fn(x1), atol=1e-6, rtol=1e-6)

    # 2) Larger tensor -> multi-step tiled path with 2 MiB (256, 2048) tiles.
    x2 = jax.random.normal(k2, (8, 256, 1024), dtype=jnp.float32)
    y2 = jax.block_until_ready(module(x2))
    assert jnp.allclose(y2, wrapped_fn(x2), atol=1e-6, rtol=1e-6)

    # 3) bf16 input -> dtype-aware sublane tiling.
    x3 = jax.random.normal(k3, (4, 8, 32), dtype=jnp.bfloat16)
    y3 = jax.block_until_ready(module(x3))
    assert y3.dtype == jnp.bfloat16
    assert jnp.allclose(
        y3.astype(jnp.float32),
        wrapped_fn(x3).astype(jnp.float32),
        atol=1e-2,
        rtol=1e-2,
    )

    # 4) Small odd-sized tensor (not a multiple of 128) -> single-block path.
    x4 = jax.random.normal(k4, (3, 5, 7), dtype=jnp.float32)
    y4 = jax.block_until_ready(module(x4))
    assert jnp.allclose(y4, wrapped_fn(x4), atol=1e-6, rtol=1e-6)

    # 5) Large odd-sized tensor -> padded fallback path with ragged last block.
    x5 = jax.random.normal(k5, (1025, 513), dtype=jnp.float32)
    y5 = jax.block_until_ready(module(x5))
    assert jnp.allclose(y5, wrapped_fn(x5), atol=1e-6, rtol=1e-6)

    print("KERNEL_OK")
</pallas_src>

<mosaic_0001>
module attributes {stable_mosaic.version = 11 : i64} {
  func.func @_elementwise_kernel(%arg0: i32, %arg1: memref<1x2048xf32, #tpu.memory_space<vmem>>, %arg2: memref<1x2048xf32, #tpu.memory_space<vmem>>) attributes {dimension_semantics = [#tpu.dimension_semantics<parallel>], iteration_bounds = array<i64: 1>, scalar_prefetch = 0 : i64, scratch_operands = 0 : i64, tpu.core_type = #tpu.core_type<tc>, window_params = [{transform_indices = @transform_0, window_bounds = array<i64: 1, 2048>}, {transform_indices = @transform_1, window_bounds = array<i64: 1, 2048>}]} {
    %c0 = arith.constant 0 : index
    %c0_0 = arith.constant 0 : index
    %0 = vector.load %arg1[%c0, %c0_0] : memref<1x2048xf32, #tpu.memory_space<vmem>>, vector<1x2048xf32>
    %cst = arith.constant 2.000000e+00 : f32
    %1 = vector.broadcast %cst : f32 to vector<1x2048xf32>
    %2 = arith.mulf %0, %1 : vector<1x2048xf32>
    %cst_1 = arith.constant 1.000000e+00 : f32
    %3 = vector.broadcast %cst_1 : f32 to vector<1x2048xf32>
    %4 = arith.addf %2, %3 : vector<1x2048xf32>
    %c0_2 = arith.constant 0 : index
    %c0_3 = arith.constant 0 : index
    %5 = vector.load %arg2[%c0_2, %c0_3] : memref<1x2048xf32, #tpu.memory_space<vmem>>, vector<1x2048xf32>
    tpu.vector_store %arg2[%c0_2, %c0_3], %4 {strides = array<i32>} : memref<1x2048xf32, #tpu.memory_space<vmem>>, vector<1x2048xf32>,
    return
  }
  func.func @transform_0(%arg0: i32) -> (i32, i32) {
    %c0_i32 = arith.constant 0 : i32
    %c0_i32_0 = arith.constant 0 : i32
    return %arg0, %c0_i32 : i32, i32
  }
  func.func @transform_1(%arg0: i32) -> (i32, i32) {
    %c0_i32 = arith.constant 0 : i32
    %c0_i32_0 = arith.constant 0 : i32
    return %arg0, %c0_i32 : i32, i32
  }
}

</mosaic_0001>

<llo_original>
// kernel: tpu_custom_call.1
$region0: #{tpu_custom_call.1}
  #allocation0 [shape = 'u32[]', space=smem, size = 0x4, offset = 0x4, fixed_abs, tag = 'smem constant byte address 0x4 - core index']
  #allocation1 [shape = 'u32[72,128]{1,0:T(1,128)}', space=vmem, size = 0x9000, scoped, tag = 'internal scratch']
  %s0 = inlined_call_operand.hbm [shape: f32[1,2048], index: 0, kind: input, shape index: {}]
  %s1 = inlined_call_operand.hbm [shape: f32[1,2048], index: 1, kind: output, shape index: {}]
  %s2 = sld [smem:[#allocation0]]
  $region18: #{tpu_custom_call.1} parent=0
    _
  %s4 = ssub.s32 1, %s2
  %s5 = scalar_select 0, %s4, %s2
  $region1: #{tpu_custom_call.1} parent=0
    #allocation2 [shape = 'u8[8192]{0}', space=vmem, size = 0x2000, scoped, tag = 'input window, operand 0, single buffered']
    #allocation3 [shape = 's32[1]{0}', space=sflag, size = 0x4, scoped, tag = 'scoped memory for tpu_custom_call.1']
    #allocation4 [shape = 's32[1]{0}', space=sflag, size = 0x4, scoped, tag = 'scoped memory for tpu_custom_call.1']
    #allocation5 [shape = 'u8[8192]{0}', space=vmem, size = 0x2000, scoped, tag = 'output window, operand 0, single buffered']
    %6 = vsyncpa [#allocation3], 0
    %7 = vsyncpa [#allocation4], 0
    // Predicated region
    $region2: #{tpu_custom_call.1} parent=1 // pred_check
      _
    $region3: #{tpu_custom_call.1} parent=1 // pred_check_branch
      %9 = sbr.rel (0) target = $region5
    $region4: #{tpu_custom_call.1} parent=1 // pred_region
      %11 = vsyncadd [#allocation3], 0
      %s13 = sshll.u32 %s0, 4
      %s14 = int_to_ptr.hbm [resolvable:$true] %s13
      %s15 = sshll.u32 [#allocation2], 4
      %s16 = int_to_ptr.vmem [resolvable:$true] %s15
      %18 = dma.hbm_to_vmem [thread:$0]  %s14, 256, %s16, [#allocation3]
    $region5: #{tpu_custom_call.1} parent=1 // pred_fallthru
      _
    // Predicated region
    $region6: #{tpu_custom_call.1} parent=1 // pred_check
      _
    $region7: #{tpu_custom_call.1} parent=1 // pred_check_branch
      %20 = sbr.rel (0) target = $region9
    $region8: #{tpu_custom_call.1} parent=1 // pred_region
      %22 = dma.done [#allocation3], 256
    $region9: #{tpu_custom_call.1} parent=1 // pred_fallthru
      _
    %v23 = vld [vmem:[#allocation2] sm:$0xff]
    %v24 = vld [vmem:[#allocation2 + $0x8] sm:$0xff]
    %v25 = vmul.f32 %v23, 2.0
    %v26 = vmul.f32 %v24, 2.0
    %v27 = vadd.f32 %v25, 1.0
    %v28 = vadd.f32 %v26, 1.0
    %29 = vst [vmem:[#allocation5] sm:$0xff] %v27
    %30 = vst [vmem:[#allocation5 + $0x8] sm:$0xff] %v28
    // Predicated region
    $region10: #{tpu_custom_call.1} parent=1 // pred_check
      _
    $region11: #{tpu_custom_call.1} parent=1 // pred_check_branch
      %32 = sbr.rel (0) target = $region13
    $region12: #{tpu_custom_call.1} parent=1 // pred_region
      %34 = vsyncadd [#allocation4], 0
      %s36 = sshll.u32 [#allocation5], 4
      %s37 = int_to_ptr.vmem [resolvable:$true] %s36
      %s38 = sshll.u32 %s1, 4
      %s39 = int_to_ptr.hbm [resolvable:$true] %s38
      %41 = dma.vmem_to_hbm [thread:$0]  %s37, 256, %s39, [#allocation4]
    $region13: #{tpu_custom_call.1} parent=1 // pred_fallthru
      _
    // Predicated region
    $region14: #{tpu_custom_call.1} parent=1 // pred_check
      _
    $region15: #{tpu_custom_call.1} parent=1 // pred_check_branch
      %43 = sbr.rel (0) target = $region17
    $region16: #{tpu_custom_call.1} parent=1 // pred_region
      %45 = dma.done [#allocation4], 256
    $region17: #{tpu_custom_call.1} parent=1 // pred_fallthru
      _
    %46 = vsyncpa [#allocation3], 1
    %47 = vsyncpa [#allocation4], 1

</llo_original>
